<compile_context>
chip_gen: v7x
topology: tpu7x:2x2x1
jax: 0.10.0
libtpu: 0.0.40
codegen_flags: <defaults>
</compile_context>

<pallas_src>
import functools

import jax
import jax.numpy as jnp
from jax.experimental import pallas as pl
from jax.experimental.pallas import tpu as pltpu

# Hyperparameters (deterministic, in-script; mirror parameter[...] dict).
EPSILON = 0.1                       # parameter['Hyperparameter']['epsilon']
T = 1.0                             # parameter['OU_Process']['T']
NUM_PARTITION = 10                  # parameter['Deep_Learning']['num_partition']
LEN_PARTITION = T / NUM_PARTITION

LANES = 128
SUBLANES = 8
BLOCK_ELEMS = SUBLANES * LANES      # 1024
MAX_TILE_ROWS = 4096                # (4096, 128) f32 tile = 2 MiB per input


def _num_splits():
    """Use a 2-way 'parallel' split only on 2-TensorCore chips (v7x)."""
    try:
        kind = jax.devices()[0].device_kind.lower()
    except Exception:
        return 1
    return 2 if "v7" in kind else 1


def _loss_partial_kernel(pred_ref, tgt_ref, diff_ref, phi_ref, acc_ref, *,
                         inv_len_partition, inv_eps_sq, tile_rows,
                         blocks_per_split, valid_rows, last_block,
                         need_boundary_mask):
    """Accumulates per-split loss partial sums into a resident (8,128) block."""
    c = pl.program_id(0)            # split ("parallel")
    j = pl.program_id(1)            # chunk within split ("arbitrary" reduction)

    @pl.when(j == 0)
    def _():
        acc_ref[...] = jnp.zeros_like(acc_ref)

    n_chunks = tile_rows // SUBLANES
    unroll = min(4, n_chunks)

    def chunk_term(r0, mask_rows):
        # One (8, 128) row-chunk: ~4 vregs of loads + a few vregs of temps,
        # never a full-tile intermediate.
        sl = pl.ds(pl.multiple_of(r0, SUBLANES), SUBLANES)
        o = pred_ref[sl, :].astype(jnp.float32)
        t = tgt_ref[sl, :].astype(jnp.float32)
        d = diff_ref[sl, :].astype(jnp.float32)
        p = phi_ref[sl, :].astype(jnp.float32)
        e = t - o
        r = jnp.maximum(p - o, 0.0)
        term = e * e * inv_len_partition + d * d + inv_eps_sq * (r * r)
        if mask_rows:
            # Zero rows past the true end of the (possibly ragged) last block;
            # the out-of-bounds part of a boundary block is undefined data.
            row0 = (c * blocks_per_split + j) * tile_rows + r0
            row_idx = jax.lax.broadcasted_iota(jnp.int32, term.shape, 0) + row0
            term = jnp.where(row_idx < valid_rows, term, 0.0)
        return term

    def run(mask_rows):
        def body(i, acc):
            return acc + chunk_term(i * SUBLANES, mask_rows)
        return jax.lax.fori_loop(0, n_chunks, body, acc_ref[...], unroll=unroll)

    if need_boundary_mask:
        is_boundary = (c * blocks_per_split + j) == last_block

        @pl.when(is_boundary)
        def _():
            acc_ref[...] = run(True)

        @pl.when(jnp.logical_not(is_boundary))
        def _():
            acc_ref[...] = run(False)
    else:
        acc_ref[...] = run(False)


@functools.partial(jax.jit, static_argnames=("epsilon", "len_partition"))
def custom_loss(output, target, diff, Phi,
                epsilon=EPSILON, len_partition=LEN_PARTITION):
    """Pallas implementation of CustomLoss.forward. Returns a scalar f32."""
    assert output.shape == target.shape == diff.shape == Phi.shape
    n = output.size

    inv_len = float(1.0 / len_partition)
    inv_eps2 = float((1.0 / epsilon) ** 2)

    o_f = jnp.ravel(output)
    t_f = jnp.ravel(target)
    d_f = jnp.ravel(diff)
    p_f = jnp.ravel(Phi)

    n_main = (n // BLOCK_ELEMS) * BLOCK_ELEMS
    tail_sum = jnp.float32(0.0)

    if n_main == 0:
        # Tiny input (< 1024 elems): cheap zero-pad of a single (8,128) block.
        # Zero padding is exact: every loss term evaluates to 0 on zeros.
        pad = BLOCK_ELEMS - n
        o_f = jnp.pad(o_f, (0, pad))
        t_f = jnp.pad(t_f, (0, pad))
        d_f = jnp.pad(d_f, (0, pad))
        p_f = jnp.pad(p_f, (0, pad))
        n_main = BLOCK_ELEMS
    elif n_main < n:
        # Fold the <1024-element ragged tail with plain jnp instead of
        # padding/copying all four full arrays.
        ot = o_f[n_main:].astype(jnp.float32)
        tt = t_f[n_main:].astype(jnp.float32)
        dt = d_f[n_main:].astype(jnp.float32)
        pt = p_f[n_main:].astype(jnp.float32)
        et = tt - ot
        rt = jnp.maximum(pt - ot, 0.0)
        tail_sum = jnp.sum(et * et * inv_len + dt * dt + inv_eps2 * rt * rt)
        o_f, t_f, d_f, p_f = (o_f[:n_main], t_f[:n_main],
                              d_f[:n_main], p_f[:n_main])

    rows = n_main // LANES                      # multiple of 8
    tile_rows = min(rows, MAX_TILE_ROWS)        # multiple of 8
    n_blocks = pl.cdiv(rows, tile_rows)
    need_boundary_mask = (rows % tile_rows) != 0
    last_block = n_blocks - 1

    # Balanced 2-way split on v7x only; otherwise a serial loop adds nothing.
    n_splits = _num_splits()
    if n_splits > 1 and (n_blocks % n_splits) != 0:
        n_splits = 1
    blocks_per_split = n_blocks // n_splits

    kernel = functools.partial(
        _loss_partial_kernel,
        inv_len_partition=inv_len,              # Python floats fold into
        inv_eps_sq=inv_eps2,                    # VPU immediates
        tile_rows=tile_rows,
        blocks_per_split=blocks_per_split,
        valid_rows=rows,
        last_block=last_block,
        need_boundary_mask=need_boundary_mask,
    )

    o2 = o_f.reshape(rows, LANES)
    t2 = t_f.reshape(rows, LANES)
    d2 = d_f.reshape(rows, LANES)
    p2 = p_f.reshape(rows, LANES)

    in_spec = pl.BlockSpec((tile_rows, LANES),
                           lambda c, j: (c * blocks_per_split + j, 0))

    elem_bytes = jnp.dtype(output.dtype).itemsize

    partials = pl.pallas_call(
        kernel,
        out_shape=jax.ShapeDtypeStruct((n_splits * SUBLANES, LANES), jnp.float32),
        grid_spec=pltpu.PrefetchScalarGridSpec(
            num_scalar_prefetch=0,
            grid=(n_splits, blocks_per_split),
            in_specs=[in_spec, in_spec, in_spec, in_spec],
            out_specs=pl.BlockSpec((SUBLANES, LANES), lambda c, j: (c, 0)),
        ),
        compiler_params=pltpu.CompilerParams(
            dimension_semantics=("parallel", "arbitrary"),
            vmem_limit_bytes=32 * 1024 * 1024,
        ),
        cost_estimate=pl.CostEstimate(
            flops=9 * n_main,
            transcendentals=0,
            bytes_accessed=4 * elem_bytes * n_main
                           + 4 * n_splits * SUBLANES * LANES,
        ),
    )(o2, t2, d2, p2)

    # Single cross-lane/sublane reduce of an <=8 KiB array, then the mean.
    total = jnp.sum(partials) + tail_sum
    return (total / jnp.float32(n)).astype(jnp.float32)


def custom_loss_reference(output, target, diff, Phi,
                          epsilon=EPSILON, len_partition=LEN_PARTITION):
    relu = jnp.maximum(Phi - output, 0.0)
    return jnp.mean((target - output) ** 2 / len_partition
                    + diff ** 2
                    + (1.0 / epsilon) ** 2 * relu ** 2)


if __name__ == "__main__":
    key = jax.random.PRNGKey(0)
    k1, k2, k3, k4 = jax.random.split(key, 4)

    # Small shapes consistent with the module's elementwise forward:
    # batch=2, channels=4, spatial=16x16 (NCHW-style tensor of predictions).
    shape = (2, 4, 16, 16)
    output = jax.random.normal(k1, shape, dtype=jnp.float32)
    target = jax.random.normal(k2, shape, dtype=jnp.float32)
    diff = jax.random.normal(k3, shape, dtype=jnp.float32)
    Phi = jax.random.normal(k4, shape, dtype=jnp.float32)

    loss = custom_loss(output, target, diff, Phi)
    jax.block_until_ready(loss)

    ref = custom_loss_reference(output, target, diff, Phi)
    assert jnp.allclose(loss, ref, rtol=1e-4, atol=1e-5), (loss, ref)

    print("KERNEL_OK")
</pallas_src>

<mosaic_0001>
module attributes {stable_mosaic.version = 11 : i64} {
  func.func @_loss_partial_kernel(%arg0: i32, %arg1: i32, %arg2: memref<16x128xf32, #tpu.memory_space<vmem>>, %arg3: memref<16x128xf32, #tpu.memory_space<vmem>>, %arg4: memref<16x128xf32, #tpu.memory_space<vmem>>, %arg5: memref<16x128xf32, #tpu.memory_space<vmem>>, %arg6: memref<8x128xf32, #tpu.memory_space<vmem>>) attributes {dimension_semantics = [#tpu.dimension_semantics<parallel>, #tpu.dimension_semantics<arbitrary>], iteration_bounds = array<i64: 1, 1>, scalar_prefetch = 0 : i64, scratch_operands = 0 : i64, tpu.core_type = #tpu.core_type<tc>, window_params = [{transform_indices = @transform_0, window_bounds = array<i64: 16, 128>}, {transform_indices = @transform_1, window_bounds = array<i64: 16, 128>}, {transform_indices = @transform_2, window_bounds = array<i64: 16, 128>}, {transform_indices = @transform_3, window_bounds = array<i64: 16, 128>}, {transform_indices = @transform_4, window_bounds = array<i64: 8, 128>}]} {
    %c0_i32 = arith.constant 0 : i32
    %0 = arith.cmpi eq, %arg1, %c0_i32 : i32
    %1 = arith.extui %0 : i1 to i32
    %c0_i32_0 = arith.constant 0 : i32
    %2 = arith.cmpi ne, %1, %c0_i32_0 : i32
    scf.if %2 {
      %cst_19 = arith.constant 0.000000e+00 : f32
      %53 = vector.broadcast %cst_19 : f32 to vector<8x128xf32>
      %c0_20 = arith.constant 0 : index
      %c0_21 = arith.constant 0 : index
      %54 = vector.load %arg6[%c0_20, %c0_21] : memref<8x128xf32, #tpu.memory_space<vmem>>, vector<8x128xf32>
      tpu.vector_store %arg6[%c0_20, %c0_21], %53 {strides = array<i32>} : memref<8x128xf32, #tpu.memory_space<vmem>>, vector<8x128xf32>,
    } else {
    }
    %c0 = arith.constant 0 : index
    %c0_1 = arith.constant 0 : index
    %3 = vector.load %arg6[%c0, %c0_1] : memref<8x128xf32, #tpu.memory_space<vmem>>, vector<8x128xf32>
    %c0_i32_2 = arith.constant 0 : i32
    %c8_i32 = arith.constant 8 : i32
    %4 = arith.muli %c0_i32_2, %c8_i32 : i32
    %5 = tpu.assume_multiple %4, 8 : i32
    %6 = arith.index_cast %5 : i32 to index
    %c0_3 = arith.constant 0 : index
    %7 = vector.load %arg2[%6, %c0_3] : memref<16x128xf32, #tpu.memory_space<vmem>>, vector<8x128xf32>
    %8 = arith.index_cast %5 : i32 to index
    %c0_4 = arith.constant 0 : index
    %9 = vector.load %arg3[%8, %c0_4] : memref<16x128xf32, #tpu.memory_space<vmem>>, vector<8x128xf32>
    %10 = arith.index_cast %5 : i32 to index
    %c0_5 = arith.constant 0 : index
    %11 = vector.load %arg4[%10, %c0_5] : memref<16x128xf32, #tpu.memory_space<vmem>>, vector<8x128xf32>
    %12 = arith.index_cast %5 : i32 to index
    %c0_6 = arith.constant 0 : index
    %13 = vector.load %arg5[%12, %c0_6] : memref<16x128xf32, #tpu.memory_space<vmem>>, vector<8x128xf32>
    %14 = arith.subf %9, %7 : vector<8x128xf32>
    %15 = arith.subf %13, %7 : vector<8x128xf32>
    %cst = arith.constant 0.000000e+00 : f32
    %16 = vector.broadcast %cst : f32 to vector<8x128xf32>
    %17 = arith.maximumf %15, %16 : vector<8x128xf32>
    %18 = arith.mulf %14, %14 : vector<8x128xf32>
    %cst_7 = arith.constant 1.000000e+01 : f32
    %19 = vector.broadcast %cst_7 : f32 to vector<8x128xf32>
    %20 = arith.mulf %18, %19 : vector<8x128xf32>
    %21 = arith.mulf %11, %11 : vector<8x128xf32>
    %22 = arith.addf %20, %21 : vector<8x128xf32>
    %23 = arith.mulf %17, %17 : vector<8x128xf32>
    %cst_8 = arith.constant 1.000000e+02 : f32
    %24 = vector.broadcast %cst_8 : f32 to vector<8x128xf32>
    %25 = arith.mulf %24, %23 : vector<8x128xf32>
    %26 = arith.addf %22, %25 : vector<8x128xf32>
    %27 = arith.addf %3, %26 : vector<8x128xf32>
    %c1_i32 = arith.constant 1 : i32
    %c8_i32_9 = arith.constant 8 : i32
    %28 = arith.muli %c1_i32, %c8_i32_9 : i32
    %29 = tpu.assume_multiple %28, 8 : i32
    %30 = arith.index_cast %29 : i32 to index
    %c0_10 = arith.constant 0 : index
    %31 = vector.load %arg2[%30, %c0_10] : memref<16x128xf32, #tpu.memory_space<vmem>>, vector<8x128xf32>
    %32 = arith.index_cast %29 : i32 to index
    %c0_11 = arith.constant 0 : index
    %33 = vector.load %arg3[%32, %c0_11] : memref<16x128xf32, #tpu.memory_space<vmem>>, vector<8x128xf32>
    %34 = arith.index_cast %29 : i32 to index
    %c0_12 = arith.constant 0 : index
    %35 = vector.load %arg4[%34, %c0_12] : memref<16x128xf32, #tpu.memory_space<vmem>>, vector<8x128xf32>
    %36 = arith.index_cast %29 : i32 to index
    %c0_13 = arith.constant 0 : index
    %37 = vector.load %arg5[%36, %c0_13] : memref<16x128xf32, #tpu.memory_space<vmem>>, vector<8x128xf32>
    %38 = arith.subf %33, %31 : vector<8x128xf32>
    %39 = arith.subf %37, %31 : vector<8x128xf32>
    %cst_14 = arith.constant 0.000000e+00 : f32
    %40 = vector.broadcast %cst_14 : f32 to vector<8x128xf32>
    %41 = arith.maximumf %39, %40 : vector<8x128xf32>
    %42 = arith.mulf %38, %38 : vector<8x128xf32>
    %cst_15 = arith.constant 1.000000e+01 : f32
    %43 = vector.broadcast %cst_15 : f32 to vector<8x128xf32>
    %44 = arith.mulf %42, %43 : vector<8x128xf32>
    %45 = arith.mulf %35, %35 : vector<8x128xf32>
    %46 = arith.addf %44, %45 : vector<8x128xf32>
    %47 = arith.mulf %41, %41 : vector<8x128xf32>
    %cst_16 = arith.constant 1.000000e+02 : f32
    %48 = vector.broadcast %cst_16 : f32 to vector<8x128xf32>
    %49 = arith.mulf %48, %47 : vector<8x128xf32>
    %50 = arith.addf %46, %49 : vector<8x128xf32>
    %51 = arith.addf %27, %50 : vector<8x128xf32>
    %c2_i32 = arith.constant 2 : i32
    %c0_17 = arith.constant 0 : index
    %c0_18 = arith.constant 0 : index
    %52 = vector.load %arg6[%c0_17, %c0_18] : memref<8x128xf32, #tpu.memory_space<vmem>>, vector<8x128xf32>
    tpu.vector_store %arg6[%c0_17, %c0_18], %51 {strides = array<i32>} : memref<8x128xf32, #tpu.memory_space<vmem>>, vector<8x128xf32>,
    return
  }
  func.func @transform_0(%arg0: i32, %arg1: i32) -> (i32, i32) {
    %c1_i32 = arith.constant 1 : i32
    %0 = arith.muli %arg0, %c1_i32 : i32
    %1 = arith.addi %0, %arg1 : i32
    %c0_i32 = arith.constant 0 : i32
    %c0_i32_0 = arith.constant 0 : i32
    return %1, %c0_i32 : i32, i32
  }
  func.func @transform_1(%arg0: i32, %arg1: i32) -> (i32, i32) {
    %c1_i32 = arith.constant 1 : i32
    %0 = arith.muli %arg0, %c1_i32 : i32
    %1 = arith.addi %0, %arg1 : i32
    %c0_i32 = arith.constant 0 : i32
    %c0_i32_0 = arith.constant 0 : i32
    return %1, %c0_i32 : i32, i32
  }
  func.func @transform_2(%arg0: i32, %arg1: i32) -> (i32, i32) {
    %c1_i32 = arith.constant 1 : i32
    %0 = arith.muli %arg0, %c1_i32 : i32
    %1 = arith.addi %0, %arg1 : i32
    %c0_i32 = arith.constant 0 : i32
    %c0_i32_0 = arith.constant 0 : i32
    return %1, %c0_i32 : i32, i32
  }
  func.func @transform_3(%arg0: i32, %arg1: i32) -> (i32, i32) {
    %c1_i32 = arith.constant 1 : i32
    %0 = arith.muli %arg0, %c1_i32 : i32
    %1 = arith.addi %0, %arg1 : i32
    %c0_i32 = arith.constant 0 : i32
    %c0_i32_0 = arith.constant 0 : i32
    return %1, %c0_i32 : i32, i32
  }
  func.func @transform_4(%arg0: i32, %arg1: i32) -> (i32, i32) {
    %c0_i32 = arith.constant 0 : i32
    %c0_i32_0 = arith.constant 0 : i32
    return %arg0, %c0_i32 : i32, i32
  }
}

</mosaic_0001>

<llo_original>
// kernel: custom_loss.1
$region0: #{custom_loss.1}
  #allocation0 [shape = 'u32[]', space=smem, size = 0x4, offset = 0x4, fixed_abs, tag = 'smem constant byte address 0x4 - core index']
  #allocation1 [shape = 'u32[144,128]{1,0:T(1,128)}', space=vmem, size = 0x12000, scoped, tag = 'internal scratch']
  %s0 = inlined_call_operand.vmem [shape: f32[16,128], index: 0, kind: input, shape index: {}]
  %s1 = inlined_call_operand.vmem [shape: f32[16,128], index: 1, kind: input, shape index: {}]
  %s2 = inlined_call_operand.vmem [shape: f32[16,128], index: 2, kind: input, shape index: {}]
  %s3 = inlined_call_operand.vmem [shape: f32[16,128], index: 3, kind: input, shape index: {}]
  %s4 = inlined_call_operand.vmem [shape: f32[8,128], index: 4, kind: output, shape index: {}]
  %s5 = sld [smem:[#allocation0]]
  $region30: #{custom_loss.1} parent=0
    _
  %s7 = ssub.s32 1, %s5
  %s8 = scalar_select 0, %s7, %s5
  // Predicated region
  $region2: #{custom_loss.1} parent=0 // pred_check
    _
  $region3: #{custom_loss.1} parent=0 // pred_check_branch
    %10 = sbr.rel (0) target = $region5
  $region4: #{custom_loss.1} parent=0 // pred_region
    %s11 = sadd.s32 0, 0
    %s12 = smul.u32 2, %s11
    %p13 = scmp.lt.s32.totalorder %s12, 1
    %s14 = scalar_select %p13, %s12, 1
    %s15 = smul.addr %s14, 8
    %s16 = scalar_lea.vmem %s0, %s15
    %s17 = sadd.s32 0, 0
    %s18 = smul.u32 2, %s17
  $region5: #{custom_loss.1} parent=0 // pred_fallthru
    _
  // Predicated region
  $region6: #{custom_loss.1} parent=0 // pred_check
    _
  $region7: #{custom_loss.1} parent=0 // pred_check_branch
    %20 = sbr.rel (0) target = $region9
  $region8: #{custom_loss.1} parent=0 // pred_region
    %s21 = sadd.s32 0, 0
    %s22 = smul.u32 2, %s21
    %p23 = scmp.lt.s32.totalorder %s22, 1
    %s24 = scalar_select %p23, %s22, 1
    %s25 = smul.addr %s24, 8
    %s26 = scalar_lea.vmem %s1, %s25
    %s27 = sadd.s32 0, 0
    %s28 = smul.u32 2, %s27
  $region9: #{custom_loss.1} parent=0 // pred_fallthru
    _
  // Predicated region
  $region10: #{custom_loss.1} parent=0 // pred_check
    _
  $region11: #{custom_loss.1} parent=0 // pred_check_branch
    %30 = sbr.rel (0) target = $region13
  $region12: #{custom_loss.1} parent=0 // pred_region
    %s31 = sadd.s32 0, 0
    %s32 = smul.u32 2, %s31
    %p33 = scmp.lt.s32.totalorder %s32, 1
    %s34 = scalar_select %p33, %s32, 1
    %s35 = smul.addr %s34, 8
    %s36 = scalar_lea.vmem %s2, %s35
    %s37 = sadd.s32 0, 0
    %s38 = smul.u32 2, %s37
  $region13: #{custom_loss.1} parent=0 // pred_fallthru
    _
  // Predicated region
  $region14: #{custom_loss.1} parent=0 // pred_check
    _
  $region15: #{custom_loss.1} parent=0 // pred_check_branch
    %40 = sbr.rel (0) target = $region17
  $region16: #{custom_loss.1} parent=0 // pred_region
    %s41 = sadd.s32 0, 0
    %s42 = smul.u32 2, %s41
    %p43 = scmp.lt.s32.totalorder %s42, 1
    %s44 = scalar_select %p43, %s42, 1
    %s45 = smul.addr %s44, 8
    %s46 = scalar_lea.vmem %s3, %s45
    %s47 = sadd.s32 0, 0
    %s48 = smul.u32 2, %s47
  $region17: #{custom_loss.1} parent=0 // pred_fallthru
    _
  %s49 = sadd.s32 0, 0
  %s50 = smul.u32 2, %s49
  %p51 = scmp.lt.s32.totalorder %s50, 1
  %s52 = scalar_select %p51, %s50, 1
  %s53 = smul.addr %s52, 8
  %s54 = scalar_lea.vmem %s0, %s53
  %s55 = sadd.s32 0, 0
  %s56 = smul.u32 2, %s55
  %p57 = scmp.lt.s32.totalorder %s56, 1
  %s58 = scalar_select %p57, %s56, 1
  %s59 = smul.addr %s58, 8
  %s60 = scalar_lea.vmem %s1, %s59
  %s61 = sadd.s32 0, 0
  %s62 = smul.u32 2, %s61
  %p63 = scmp.lt.s32.totalorder %s62, 1
  %s64 = scalar_select %p63, %s62, 1
  %s65 = smul.addr %s64, 8
  %s66 = scalar_lea.vmem %s2, %s65
  %s67 = sadd.s32 0, 0
  %s68 = smul.u32 2, %s67
  %p69 = scmp.lt.s32.totalorder %s68, 1
  %s70 = scalar_select %p69, %s68, 1
  %s71 = smul.addr %s70, 8
  %s72 = scalar_lea.vmem %s3, %s71
  %s73 = sadd.s32 0, 0
  %s74 = smul.u32 2, %s73
  %p75 = scmp.lt.s32.totalorder %s74, 1
  %s76 = scalar_select %p75, %s74, 1
  %s77 = smul.addr %s76, 8
  %s78 = scalar_lea.vmem %s0, %s77
  %s79 = sadd.s32 0, 0
  %s80 = smul.u32 2, %s79
  %s81 = sadd.s32 0, 0
  %s82 = smul.u32 2, %s81
  %p83 = scmp.lt.s32.totalorder %s82, 1
  %s84 = scalar_select %p83, %s82, 1
  %s85 = smul.addr %s84, 8
  %s86 = scalar_lea.vmem %s1, %s85
  %s87 = sadd.s32 0, 0
  %s88 = smul.u32 2, %s87
  %s89 = sadd.s32 0, 0
  %s90 = smul.u32 2, %s89
  %p91 = scmp.lt.s32.totalorder %s90, 1
  %s92 = scalar_select %p91, %s90, 1
  %s93 = smul.addr %s92, 8
  %s94 = scalar_lea.vmem %s2, %s93
  %s95 = sadd.s32 0, 0
  %s96 = smul.u32 2, %s95
  %s97 = sadd.s32 0, 0
  %s98 = smul.u32 2, %s97
  %p99 = scmp.lt.s32.totalorder %s98, 1
  %s100 = scalar_select %p99, %s98, 1
  %s101 = smul.addr %s100, 8
  %s102 = scalar_lea.vmem %s3, %s101
  %s103 = sadd.s32 0, 0
  %s104 = smul.u32 2, %s103
  %p105 = scmp.eq.s32.totalorder 0, 0
  // Predicated region
  $region18: #{custom_loss.1} parent=0 // pred_check
    %p106 = pneg %p105
  $region19: #{custom_loss.1} parent=0 // pred_check_branch
    %108 = sbr.rel (%p106) target = $region21
  $region20: #{custom_loss.1} parent=0 // pred_region
    %109 = vst [vmem:[%s4] sm:$0xff] 0.0
  $region21: #{custom_loss.1} parent=0 // pred_fallthru
    _
  %v110 = vld [vmem:[%s4] sm:$0xff]
  %v111 = vld [vmem:[%s78] sm:$0xff]
  %v112 = vld [vmem:[%s86] sm:$0xff]
  %v113 = vld [vmem:[%s94] sm:$0xff]
  %v114 = vld [vmem:[%s102] sm:$0xff]
  %v115 = vsub.f32 %v112, %v111
  %v116 = vsub.f32 %v114, %v111
  %v117 = vmax.f32 %v116, 0.0
  %v118 = vmul.f32 %v115, %v115
  %v119 = vmul.f32 %v118, 10.0
  %v120 = vmul.f32 %v113, %v113
  %v121 = vadd.f32 %v119, %v120
  %v122 = vmul.f32 %v117, %v117
  %v123 = vmul.f32 %v122, 100.0
  %v124 = vadd.f32 %v121, %v123
  %v125 = vadd.f32 %v110, %v124
  %s126 = scalar_lea.vmem %s78, 8
  %v127 = vld [vmem:[%s126] sm:$0xff]
  %s128 = scalar_lea.vmem %s86, 8
  %v129 = vld [vmem:[%s128] sm:$0xff]
  %s130 = scalar_lea.vmem %s94, 8
  %v131 = vld [vmem:[%s130] sm:$0xff]
  %s132 = scalar_lea.vmem %s102, 8
  %v133 = vld [vmem:[%s132] sm:$0xff]
  %v134 = vsub.f32 %v129, %v127
  %v135 = vsub.f32 %v133, %v127
  %v136 = vmax.f32 %v135, 0.0
  %v137 = vmul.f32 %v134, %v134
  %v138 = vmul.f32 %v137, 10.0
  %v139 = vmul.f32 %v131, %v131
  %v140 = vadd.f32 %v138, %v139
  %v141 = vmul.f32 %v136, %v136
  %v142 = vmul.f32 %v141, 100.0
  %v143 = vadd.f32 %v140, %v142
  %v144 = vadd.f32 %v125, %v143
  %145 = vst [vmem:[%s4] sm:$0xff] %v144
  // Predicated region
  $region22: #{custom_loss.1} parent=0 // pred_check
    _
  $region23: #{custom_loss.1} parent=0 // pred_check_branch
    %147 = sbr.rel (0) target = $region25
  $region24: #{custom_loss.1} parent=0 // pred_region
    _
  $region25: #{custom_loss.1} parent=0 // pred_fallthru
    _
  // Predicated region
  $region26: #{custom_loss.1} parent=0 // pred_check
    _
  $region27: #{custom_loss.1} parent=0 // pred_check_branch
    %149 = sbr.rel (0) target = $region29
  $region28: #{custom_loss.1} parent=0 // pred_region
    _
  $region29: #{custom_loss.1} parent=0 // pred_fallthru
    _

</llo_original>
